<compile_context>
chip_gen: v7x
topology: tpu7x:2x2x1
jax: 0.10.0
libtpu: 0.0.40
codegen_flags: <defaults>
</compile_context>

<pallas_src>
import jax
import jax.numpy as jnp
import numpy as np
from jax.experimental import pallas as pl
from jax.experimental.pallas import tpu as pltpu


def rms_norm_pallas(x_nchw, scale, offset, eps=1e-6, max_tile=2048):
    """RMSNorm over dim=1 of an NCHW tensor, matching the torch module.

    x_nchw : (N, C, H, W)
    scale  : (C,)   (torch stores it as (C, 1, 1))
    offset : (C,)
    """
    N, C, H, W = x_nchw.shape
    S = H * W
    x2 = x_nchw.reshape(N, C, S)          # free reshape: merge trailing dims

    # Largest multiple-of-128 spatial tile that divides S (fallback: full S).
    T = S
    for cand in (max_tile, 1024, 512, 256, 128):
        if cand <= S and S % cand == 0:
            T = cand
            break

    inv_sqrt_c = float(C) ** (-0.5)

    def kernel(x_ref, s_ref, b_ref, o_ref):
        xf = x_ref[...].astype(jnp.float32)                # (1, C, T)
        ss = jnp.sum(xf * xf, axis=1, keepdims=True)       # (1, 1, T) sublane reduce
        rms = jnp.sqrt(ss) * inv_sqrt_c                    # ||x||_2 / sqrt(C)
        inv = 1.0 / (rms + eps)                            # eps outside sqrt (torch)
        sc = s_ref[...].astype(jnp.float32)[None]          # (1, C, 1), hoisted once
        off = b_ref[...].astype(jnp.float32)[None]         # (1, C, 1)
        o_ref[...] = (sc * (xf * inv) + off).astype(o_ref.dtype)

    itemsize = jnp.dtype(x_nchw.dtype).itemsize
    cost = pl.CostEstimate(
        flops=5 * N * C * S,                    # sq, sum, *inv, *scale, +offset
        transcendentals=N * S,                  # sqrt / reciprocal per position
        bytes_accessed=(2 * N * C * S + 2 * C) * itemsize,
    )

    out = pl.pallas_call(
        kernel,
        out_shape=jax.ShapeDtypeStruct((N, C, S), x_nchw.dtype),
        grid=(N, S // T),
        in_specs=[
            pl.BlockSpec((1, C, T), lambda n, s: (n, 0, s)),
            pl.BlockSpec((C, 1), lambda n, s: (0, 0)),
            pl.BlockSpec((C, 1), lambda n, s: (0, 0)),
        ],
        out_specs=pl.BlockSpec((1, C, T), lambda n, s: (n, 0, s)),
        compiler_params=pltpu.CompilerParams(
            dimension_semantics=("parallel", "parallel")),
        cost_estimate=cost,
    )(x2, scale.reshape(C, 1), offset.reshape(C, 1))

    return out.reshape(N, C, H, W)


def _ref_rmsnorm(x, scale, offset, eps=1e-6):
    """Pure-XLA reference mirroring the torch forward exactly."""
    norm_x = jnp.sqrt(jnp.sum(x * x, axis=1, keepdims=True))   # x.norm(2, dim=1)
    rms_x = norm_x * (x.shape[1] ** (-0.5))
    x_normed = x / (rms_x + eps)
    return scale[None, :, None, None] * x_normed + offset[None, :, None, None]


if __name__ == "__main__":
    key = jax.random.PRNGKey(0)
    kx, ks, kb = jax.random.split(key, 3)

    # module default dim=64; small batch / spatial for the smoke test
    N, C, H, W = 2, 64, 16, 16
    x = jax.random.normal(kx, (N, C, H, W), jnp.float32)
    scale = 1.0 + 0.1 * jax.random.normal(ks, (C,), jnp.float32)
    offset = 0.1 * jax.random.normal(kb, (C,), jnp.float32)

    out = jax.block_until_ready(rms_norm_pallas(x, scale, offset))
    ref = jax.block_until_ready(_ref_rmsnorm(x, scale, offset))

    assert out.shape == (N, C, H, W)
    np.testing.assert_allclose(np.asarray(out), np.asarray(ref),
                               rtol=1e-4, atol=1e-5)
    print("KERNEL_OK")
</pallas_src>

<mosaic_0001>
module attributes {stable_mosaic.version = 11 : i64} {
  func.func @kernel(%arg0: i32, %arg1: i32, %arg2: memref<1x64x256xf32, #tpu.memory_space<vmem>>, %arg3: memref<64x1xf32, #tpu.memory_space<vmem>>, %arg4: memref<64x1xf32, #tpu.memory_space<vmem>>, %arg5: memref<1x64x256xf32, #tpu.memory_space<vmem>>) attributes {dimension_semantics = [#tpu.dimension_semantics<parallel>, #tpu.dimension_semantics<parallel>], iteration_bounds = array<i64: 2, 1>, scalar_prefetch = 0 : i64, scratch_operands = 0 : i64, tpu.core_type = #tpu.core_type<tc>, window_params = [{transform_indices = @transform_0, window_bounds = array<i64: 1, 64, 256>}, {pipeline_mode = #tpu.pipeline_mode<synchronous>, transform_indices = @transform_1, window_bounds = array<i64: 64, 1>}, {pipeline_mode = #tpu.pipeline_mode<synchronous>, transform_indices = @transform_2, window_bounds = array<i64: 64, 1>}, {transform_indices = @transform_3, window_bounds = array<i64: 1, 64, 256>}]} {
    %c0 = arith.constant 0 : index
    %c0_0 = arith.constant 0 : index
    %c0_1 = arith.constant 0 : index
    %0 = vector.load %arg2[%c0, %c0_0, %c0_1] : memref<1x64x256xf32, #tpu.memory_space<vmem>>, vector<1x64x256xf32>
    %1 = arith.mulf %0, %0 : vector<1x64x256xf32>
    %cst = arith.constant dense<0.000000e+00> : vector<1x256xf32>
    %2 = vector.multi_reduction <add>, %1, %cst [1] : vector<1x64x256xf32> to vector<1x256xf32>
    %3 = vector.shape_cast %2 : vector<1x256xf32> to vector<1x1x256xf32>
    %4 = math.sqrt %3 : vector<1x1x256xf32>
    %cst_2 = arith.constant 1.250000e-01 : f32
    %5 = vector.broadcast %cst_2 : f32 to vector<1x1x256xf32>
    %6 = arith.mulf %4, %5 : vector<1x1x256xf32>
    %cst_3 = arith.constant 9.99999997E-7 : f32
    %7 = vector.broadcast %cst_3 : f32 to vector<1x1x256xf32>
    %8 = arith.addf %6, %7 : vector<1x1x256xf32>
    %cst_4 = arith.constant 1.000000e+00 : f32
    %9 = vector.broadcast %cst_4 : f32 to vector<1x1x256xf32>
    %10 = arith.divf %9, %8 : vector<1x1x256xf32>
    %c0_5 = arith.constant 0 : index
    %c0_6 = arith.constant 0 : index
    %11 = vector.load %arg3[%c0_5, %c0_6] : memref<64x1xf32, #tpu.memory_space<vmem>>, vector<64x1xf32>
    %12 = vector.shape_cast %11 : vector<64x1xf32> to vector<1x64x1xf32>
    %c0_7 = arith.constant 0 : index
    %c0_8 = arith.constant 0 : index
    %13 = vector.load %arg4[%c0_7, %c0_8] : memref<64x1xf32, #tpu.memory_space<vmem>>, vector<64x1xf32>
    %14 = vector.shape_cast %13 : vector<64x1xf32> to vector<1x64x1xf32>
    %15 = vector.broadcast %10 : vector<1x1x256xf32> to vector<1x64x256xf32>
    %16 = arith.mulf %0, %15 : vector<1x64x256xf32>
    %17 = vector.broadcast %12 : vector<1x64x1xf32> to vector<1x64x256xf32>
    %18 = arith.mulf %17, %16 : vector<1x64x256xf32>
    %19 = vector.broadcast %14 : vector<1x64x1xf32> to vector<1x64x256xf32>
    %20 = arith.addf %18, %19 : vector<1x64x256xf32>
    %c0_9 = arith.constant 0 : index
    %c0_10 = arith.constant 0 : index
    %c0_11 = arith.constant 0 : index
    %21 = vector.load %arg5[%c0_9, %c0_10, %c0_11] : memref<1x64x256xf32, #tpu.memory_space<vmem>>, vector<1x64x256xf32>
    tpu.vector_store %arg5[%c0_9, %c0_10, %c0_11], %20 {strides = array<i32>} : memref<1x64x256xf32, #tpu.memory_space<vmem>>, vector<1x64x256xf32>,
    return
  }
  func.func @transform_0(%arg0: i32, %arg1: i32) -> (i32, i32, i32) {
    %c0_i32 = arith.constant 0 : i32
    %c0_i32_0 = arith.constant 0 : i32
    return %arg0, %c0_i32, %arg1 : i32, i32, i32
  }
  func.func @transform_1(%arg0: i32, %arg1: i32) -> (i32, i32) {
    %c0_i32 = arith.constant 0 : i32
    %c0_i32_0 = arith.constant 0 : i32
    %c0_i32_1 = arith.constant 0 : i32
    return %c0_i32, %c0_i32_0 : i32, i32
  }
  func.func @transform_2(%arg0: i32, %arg1: i32) -> (i32, i32) {
    %c0_i32 = arith.constant 0 : i32
    %c0_i32_0 = arith.constant 0 : i32
    %c0_i32_1 = arith.constant 0 : i32
    return %c0_i32, %c0_i32_0 : i32, i32
  }
  func.func @transform_3(%arg0: i32, %arg1: i32) -> (i32, i32, i32) {
    %c0_i32 = arith.constant 0 : i32
    %c0_i32_0 = arith.constant 0 : i32
    return %arg0, %c0_i32, %arg1 : i32, i32, i32
  }
}

</mosaic_0001>

<llo_original>
// kernel: tpu_custom_call.1
$region0: #{tpu_custom_call.1}
  #allocation0 [shape = 'u32[]', space=smem, size = 0x4, offset = 0x4, fixed_abs, tag = 'smem constant byte address 0x4 - core index']
  #allocation1 [shape = 'u32[144,128]{1,0:T(1,128)}', space=vmem, size = 0x12000, scoped, tag = 'internal scratch']
  %s0 = inlined_call_operand.hbm [shape: f32[2,64,256], index: 0, kind: input, shape index: {}]
  %s1 = inlined_call_operand.vmem [shape: f32[64,1], index: 1, kind: input, shape index: {}]
  %s2 = inlined_call_operand.vmem [shape: f32[64,1], index: 2, kind: input, shape index: {}]
  %s3 = inlined_call_operand.hbm [shape: f32[2,64,256], index: 3, kind: output, shape index: {}]
  %s4 = sld [smem:[#allocation0]]
  $region49: #{tpu_custom_call.1} parent=0
    _
  %s6 = ssub.s32 1, %s4
  %s7 = scalar_select 0, %s6, %s4
  $region1: #{tpu_custom_call.1} parent=0
    #allocation2 [shape = 'u8[131072]{0}', space=vmem, size = 0x20000, scoped, tag = 'input window, operand 0']
    #allocation3 [shape = 's32[2]{0}', space=sflag, size = 0x8, scoped, tag = 'scoped memory for tpu_custom_call.1']
    #allocation4 [shape = 's32[2]{0}', space=sflag, size = 0x8, scoped, tag = 'scoped memory for tpu_custom_call.1']
    #allocation5 [shape = 'u8[131072]{0}', space=vmem, size = 0x20000, scoped, tag = 'output window, operand 0']
    %8 = vsyncpa [#allocation3], 0
    %s9 = scalar_lea.sflag [#allocation3], 1
    %10 = vsyncpa %s9, 0
    %11 = vsyncpa [#allocation4], 0
    %s12 = scalar_lea.sflag [#allocation4], 1
    %13 = vsyncpa %s12, 0
    loop: start=0, step=1, limit=4
    $region2: #{tpu_custom_call.1} parent=1 // loop_pre_header
      _
    $region3: #{tpu_custom_call.1} parent=1 // loop_header
      %s15 = sphi 0, %s19
      %p16 = scmp.ge.s32.totalorder %s15, 4
      %s22 = sphi 0, %s34
      %s23 = sphi 0, %s30
      %s24 = sphi 0, %s22
      %s25 = sphi 0, %s23
      %s26 = sphi 0, %s24
      %s27 = sphi 0, %s25
      %s39 = sphi 0, %s41
      %s42 = sphi 0, %s39
      %s43 = sphi 0, %s42
      %s59 = sphi 0, %s43
      %s63 = sphi 0, %s63
      %s65 = sphi 0, %s63
      %s66 = sphi 0, %s65
      %s80 = sphi 0, %s66
      %s84 = sphi 0, %s84
      %s86 = sphi 0, %s84
      %s87 = sphi 0, %s86
      %s101 = sphi 0, %s87
      %s109 = sphi 0, %s111
      %s112 = sphi 0, %s109
      %s113 = sphi 0, %s112
      %s129 = sphi 0, %s113
    $region4: #{tpu_custom_call.1} parent=1 // loop_header_branch
      %18 = sbr.rel (%p16) target = $region8
    $region5: #{tpu_custom_call.1} parent=1 // loop_body
      %s20 = ssub.s32 %s15, 1
      %s21 = ssub.s32 %s15, 2
      %s28 = sadd.s32 1, %s23
      %p29 = scmp.ge.s32.totalorder %s28, 1
      %s30 = scalar_select %p29, 0, %s28
      %s31 = sadd.s32 1, %s22
      %s32 = scalar_select %p29, %s31, %s22
      %p33 = scmp.ge.s32.totalorder %s32, 2
      %s34 = scalar_select %p33, 0, %s32
      %s35 = ssub.s32 %s22, %s34
      %s36 = ssub.s32 %s23, %s30
      %s37 = sor.u32 %s35, %s36
      %p38 = scmp.eq.s32.totalorder %s37, 0
      %s40 = sadd.s32 %s39, 1
      %s41 = scalar_select %p38, %s39, %s40
      %p44 = pneg %p38
      %p45 = scmp.eq.s32.totalorder %s15, 1
      %p46 = por %p44, %p45
      %p47 = scmp.ne.s32.totalorder %s39, %s42
      %p48 = scmp.eq.s32.totalorder %s15, 0
      %p49 = por %p47, %p48
      %p50 = scmp.ne.s32.totalorder %s39, %s42
      %p51 = scmp.eq.s32.totalorder %s20, 1
      %p52 = por %p50, %p51
      %p53 = scmp.ne.s32.totalorder %s42, %s43
      %p54 = scmp.eq.s32.totalorder %s20, 0
      %p55 = por %p53, %p54
      %p56 = scmp.ne.s32.totalorder %s42, %s43
      %p57 = scmp.eq.s32.totalorder %s21, 1
      %p58 = por %p56, %p57
      %p60 = scmp.ne.s32.totalorder %s43, %s59
      %p61 = scmp.eq.s32.totalorder %s21, 0
      %p62 = por %p60, %p61
      %s64 = sadd.s32 %s63, 1
      %p67 = scmp.eq.s32.totalorder %s15, 1
      %p68 = scmp.ne.s32.totalorder %s63, %s65
      %p69 = scmp.eq.s32.totalorder %s15, 0
      %p70 = por %p68, %p69
      %p71 = scmp.ne.s32.totalorder %s63, %s65
      %p72 = scmp.eq.s32.totalorder %s20, 1
      %p73 = por %p71, %p72
      %p74 = scmp.ne.s32.totalorder %s65, %s66
      %p75 = scmp.eq.s32.totalorder %s20, 0
      %p76 = por %p74, %p75
      %p77 = scmp.ne.s32.totalorder %s65, %s66
      %p78 = scmp.eq.s32.totalorder %s21, 1
      %p79 = por %p77, %p78
      %p81 = scmp.ne.s32.totalorder %s66, %s80
      %p82 = scmp.eq.s32.totalorder %s21, 0
      %p83 = por %p81, %p82
      %s85 = sadd.s32 %s84, 1
      %p88 = scmp.eq.s32.totalorder %s15, 1
      %p89 = scmp.ne.s32.totalorder %s84, %s86
      %p90 = scmp.eq.s32.totalorder %s15, 0
      %p91 = por %p89, %p90
      %p92 = scmp.ne.s32.totalorder %s84, %s86
      %p93 = scmp.eq.s32.totalorder %s20, 1
      %p94 = por %p92, %p93
      %p95 = scmp.ne.s32.totalorder %s86, %s87
      %p96 = scmp.eq.s32.totalorder %s20, 0
      %p97 = por %p95, %p96
      %p98 = scmp.ne.s32.totalorder %s86, %s87
      %p99 = scmp.eq.s32.totalorder %s21, 1
      %p100 = por %p98, %p99
      %p102 = scmp.ne.s32.totalorder %s87, %s101
      %p103 = scmp.eq.s32.totalorder %s21, 0
      %p104 = por %p102, %p103
      %s105 = ssub.s32 %s22, %s34
      %s106 = ssub.s32 %s23, %s30
      %s107 = sor.u32 %s105, %s106
      %p108 = scmp.eq.s32.totalorder %s107, 0
      %s110 = sadd.s32 %s109, 1
      %s111 = scalar_select %p108, %s109, %s110
      %p114 = pneg %p108
      %p115 = scmp.eq.s32.totalorder %s15, 1
      %p116 = por %p114, %p115
      %p117 = scmp.ne.s32.totalorder %s109, %s112
      %p118 = scmp.eq.s32.totalorder %s15, 0
      %p119 = por %p117, %p118
      %p120 = scmp.ne.s32.totalorder %s109, %s112
      %p121 = scmp.eq.s32.totalorder %s20, 1
      %p122 = por %p120, %p121
      %p123 = scmp.ne.s32.totalorder %s112, %s113
      %p124 = scmp.eq.s32.totalorder %s20, 0
      %p125 = por %p123, %p124
      %p126 = scmp.ne.s32.totalorder %s112, %s113
      %p127 = scmp.eq.s32.totalorder %s21, 1
      %p128 = por %p126, %p127
      %p130 = scmp.ne.s32.totalorder %s113, %s129
      %p131 = scmp.eq.s32.totalorder %s21, 0
      %p132 = por %p130, %p131
      %p133 = scmp.le.s32.totalorder 1, %s15
      %p134 = scmp.lt.s32.totalorder %s15, 3
      %p135 = pnand %p133, %p134
      %p136 = pneg %p135
      // Predicated region
      $region9: #{tpu_custom_call.1} parent=5 // pred_check
        _
      $region10: #{tpu_custom_call.1} parent=5 // pred_check_branch
        %138 = sbr.rel (%p135) target = $region12
      $region11: #{tpu_custom_call.1} parent=5 // pred_region
        %s139 = ssub.s32 %s15, 1
        // Predicated region
        $region13: #{tpu_custom_call.1} parent=11 // pred_check
          %p140 = pneg %p76
        $region14: #{tpu_custom_call.1} parent=11 // pred_check_branch
          %142 = sbr.rel (%p140) target = $region16
        $region15: #{tpu_custom_call.1} parent=11 // pred_region
          _
        $region16: #{tpu_custom_call.1} parent=11 // pred_fallthru
          _
        // Predicated region
        $region17: #{tpu_custom_call.1} parent=11 // pred_check
          %p143 = pneg %p97
        $region18: #{tpu_custom_call.1} parent=11 // pred_check_branch
          %145 = sbr.rel (%p143) target = $region20
        $region19: #{tpu_custom_call.1} parent=11 // pred_region
          _
        $region20: #{tpu_custom_call.1} parent=11 // pred_fallthru
          _
      $region12: #{tpu_custom_call.1} parent=5 // pred_fallthru
        _
      %p146 = scmp.lt.s32.totalorder %s15, 2
      // Predicated region
      $region21: #{tpu_custom_call.1} parent=5 // pred_check
        %p147 = pneg %p146
      $region22: #{tpu_custom_call.1} parent=5 // pred_check_branch
        %149 = sbr.rel (%p147) target = $region24
      $region23: #{tpu_custom_call.1} parent=5 // pred_region
        // Predicated region
        $region25: #{tpu_custom_call.1} parent=23 // pred_check
          %p150 = pneg %p49
        $region26: #{tpu_custom_call.1} parent=23 // pred_check_branch
          %152 = sbr.rel (%p150) target = $region28
        $region27: #{tpu_custom_call.1} parent=23 // pred_region
          %s153 = sand.u32 %s39, 1
          %s154 = scalar_lea.sflag [#allocation3], %s153
          %s155 = sand.u32 %s39, 1
          %s156 = smul.addr %s155, 128
          %s157 = scalar_lea.vmem [#allocation2], %s156
          %s158 = smul.u32 2, %s23
          %s160 = ssub.s32 2048, 2048
          %161 = vsyncadd %s154, %s160
          %s162 = smul.addr %s22, 16
          %s163 = sadd.s32 %s158, %s162
          %s164 = smul.addr %s163, 128
          %s165 = scalar_lea.hbm %s0, %s164
          %s166 = sshll.u32 %s157, 4
          %s167 = int_to_ptr.vmem [resolvable:$true] %s166
          %172 = dma.hbm_to_vmem [thread:$0]  %s165, 2048, %s167, %s154, 256, 256, 16
        $region28: #{tpu_custom_call.1} parent=23 // pred_fallthru
          _
      $region24: #{tpu_custom_call.1} parent=5 // pred_fallthru
        _
      %p173 = scmp.le.s32.totalorder 1, %s15
      %p174 = scmp.lt.s32.totalorder %s15, 3
      %p175 = pnand %p173, %p174
      %p176 = pneg %p175
      // Predicated region
      $region29: #{tpu_custom_call.1} parent=5 // pred_check
        _
      $region30: #{tpu_custom_call.1} parent=5 // pred_check_branch
        %178 = sbr.rel (%p175) target = $region32
      $region31: #{tpu_custom_call.1} parent=5 // pred_region
        %s179 = ssub.s32 %s15, 1
        %s180 = sand.u32 %s42, 1
        %s181 = scalar_lea.sflag [#allocation3], %s180
        %s182 = sand.u32 %s42, 1
        %s183 = smul.addr %s182, 128
        %s184 = scalar_lea.vmem [#allocation2], %s183
        // Predicated region
        $region33: #{tpu_custom_call.1} parent=31 // pred_check
          %p185 = pneg %p55
        $region34: #{tpu_custom_call.1} parent=31 // pred_check_branch
          %187 = sbr.rel (%p185) target = $region36
        $region35: #{tpu_custom_call.1} parent=31 // pred_region
          %188 = dma.done %s181, 2048
        $region36: #{tpu_custom_call.1} parent=31 // pred_fallthru
          _
        %s189 = sand.u32 %s42, 1
        %s190 = scalar_lea.sflag [#allocation3], %s189
        %s191 = sand.u32 %s42, 1
        %s192 = smul.addr %s191, 128
        %s193 = scalar_lea.vmem [#allocation2], %s192
        %p194 = pneg %p55
        %p195 = pneg %p52
        %p196 = pneg %p76
        %p197 = pneg %p73
        %p198 = pneg %p97
        %p199 = pneg %p94
        %p200 = pneg %p125
        %p201 = pneg %p122
        %s202 = sand.u32 %s112, 1
        %s203 = scalar_lea.sflag [#allocation4], %s202
        %s204 = sand.u32 %s112, 1
        %s205 = smul.addr %s204, 128
        %s206 = scalar_lea.vmem [#allocation5], %s205
        %s207 = smul.u32 2, %s25
        %s208 = smul.u32 2, %s25
        %v209 = vld [vmem:[%s184] sm:$0xff]
        %v210 = vld [vmem:[%s184 + $0x8] sm:$0xff]
        %v211 = vld [vmem:[%s184 + $0x10] sm:$0xff]
        %v212 = vld [vmem:[%s184 + $0x18] sm:$0xff]
        %v213 = vld [vmem:[%s184 + $0x20] sm:$0xff]
        %v214 = vld [vmem:[%s184 + $0x28] sm:$0xff]
        %v215 = vld [vmem:[%s184 + $0x30] sm:$0xff]
        %v216 = vld [vmem:[%s184 + $0x38] sm:$0xff]
        %v217 = vld [vmem:[%s184 + $0x40] sm:$0xff]
        %v218 = vld [vmem:[%s184 + $0x48] sm:$0xff]
        %v219 = vld [vmem:[%s184 + $0x50] sm:$0xff]
        %v220 = vld [vmem:[%s184 + $0x58] sm:$0xff]
        %v221 = vld [vmem:[%s184 + $0x60] sm:$0xff]
        %v222 = vld [vmem:[%s184 + $0x68] sm:$0xff]
        %v223 = vld [vmem:[%s184 + $0x70] sm:$0xff]
        %v224 = vld [vmem:[%s184 + $0x78] sm:$0xff]
        %v225 = vmul.f32 %v209, %v209
        %v226 = vmul.f32 %v210, %v210
        %v227 = vmul.f32 %v211, %v211
        %v228 = vmul.f32 %v212, %v212
        %v229 = vmul.f32 %v213, %v213
        %v230 = vmul.f32 %v214, %v214
        %v231 = vmul.f32 %v215, %v215
        %v232 = vmul.f32 %v216, %v216
        %v233 = vmul.f32 %v217, %v217
        %v234 = vmul.f32 %v218, %v218
        %v235 = vmul.f32 %v219, %v219
        %v236 = vmul.f32 %v220, %v220
        %v237 = vmul.f32 %v221, %v221
        %v238 = vmul.f32 %v222, %v222
        %v239 = vmul.f32 %v223, %v223
        %v240 = vmul.f32 %v224, %v224
        %v241 = vadd.f32 %v225, %v227
        %v242 = vadd.f32 %v241, %v229
        %v243 = vadd.f32 %v242, %v231
        %v244 = vadd.f32 %v243, %v233
        %v245 = vadd.f32 %v244, %v235
        %v246 = vadd.f32 %v245, %v237
        %v247 = vadd.f32 %v246, %v239
        %v248 = vrot.slane %v247, 4
        %v249 = vadd.f32 %v247, %v248
        %v250 = vrot.slane %v249, 2
        %v251 = vadd.f32 %v249, %v250
        %v252 = vrot.slane %v251, 1
        %v253 = vadd.f32 %v251, %v252
        %v254 = vadd.f32 %v226, %v228
        %v255 = vadd.f32 %v254, %v230
        %v256 = vadd.f32 %v255, %v232
        %v257 = vadd.f32 %v256, %v234
        %v258 = vadd.f32 %v257, %v236
        %v259 = vadd.f32 %v258, %v238
        %v260 = vadd.f32 %v259, %v240
        %v261 = vrot.slane %v260, 4
        %v262 = vadd.f32 %v260, %v261
        %v263 = vrot.slane %v262, 2
        %v264 = vadd.f32 %v262, %v263
        %v265 = vrot.slane %v264, 1
        %v266 = vadd.f32 %v264, %v265
        %v267 = vrsqrt.pop %v253
        %v268 = vmul.f32 %v253, %v267
        %vm269 = vcmp.eq.f32.partialorder %v253, inf
        %v270 = vsel %vm269, %v253, %v268
        %vm271 = vcmp.eq.f32.partialorder %v253, 0.0
        %v272 = vand.u32 %v253, 2147483648
        %v273 = vsel %vm271, %v272, %v270
        %v274 = vrsqrt.pop %v266
        %v275 = vmul.f32 %v266, %v274
        %vm276 = vcmp.eq.f32.partialorder %v266, inf
        %v277 = vsel %vm276, %v266, %v275
        %vm278 = vcmp.eq.f32.partialorder %v266, 0.0
        %v279 = vand.u32 %v266, 2147483648
        %v280 = vsel %vm278, %v279, %v277
        %v281 = vmul.f32 %v273, 0.125
        %v282 = vmul.f32 %v280, 0.125
        %v283 = vadd.f32 %v281, 1e-06
        %v284 = vadd.f32 %v282, 1e-06
        %v285 = vrcp.pop %v283
        %v286 = vmul.f32 1.0, %v285
        %v287 = vrcp.pop %v284
        %v288 = vmul.f32 1.0, %v287
        %v289 = vld [vmem:[%s1] sm:$0xff]
        %v290 = vld [vmem:[%s1 + $0x8] sm:$0xff]
        %v291 = vld [vmem:[%s1 + $0x10] sm:$0xff]
        %v292 = vld [vmem:[%s1 + $0x18] sm:$0xff]
        %v293 = vld [vmem:[%s1 + $0x20] sm:$0xff]
        %v294 = vld [vmem:[%s1 + $0x28] sm:$0xff]
        %v295 = vld [vmem:[%s1 + $0x30] sm:$0xff]
        %v296 = vld [vmem:[%s1 + $0x38] sm:$0xff]
        %v297 = vld [vmem:[%s2] sm:$0xff]
        %v298 = vld [vmem:[%s2 + $0x8] sm:$0xff]
        %v299 = vld [vmem:[%s2 + $0x10] sm:$0xff]
        %v300 = vld [vmem:[%s2 + $0x18] sm:$0xff]
        %v301 = vld [vmem:[%s2 + $0x20] sm:$0xff]
        %v302 = vld [vmem:[%s2 + $0x28] sm:$0xff]
        %v303 = vld [vmem:[%s2 + $0x30] sm:$0xff]
        %v304 = vld [vmem:[%s2 + $0x38] sm:$0xff]
        %v305 = vmul.f32 %v209, %v286
        %v306 = vmul.f32 %v210, %v288
        %v307 = vmul.f32 %v211, %v286
        %v308 = vmul.f32 %v212, %v288
        %v309 = vmul.f32 %v213, %v286
        %v310 = vmul.f32 %v214, %v288
        %v311 = vmul.f32 %v215, %v286
        %v312 = vmul.f32 %v216, %v288
        %v313 = vmul.f32 %v217, %v286
        %v314 = vmul.f32 %v218, %v288
        %v315 = vmul.f32 %v219, %v286
        %v316 = vmul.f32 %v220, %v288
        %v317 = vmul.f32 %v221, %v286
        %v318 = vmul.f32 %v222, %v288
        %v319 = vmul.f32 %v223, %v286
        %v320 = vmul.f32 %v224, %v288
        %322 = vset.pattern.permute.xlu0 0
        %323 = vperm.xlu0 %322, %v289
        %v324 = vpop.permute.xlu0 %323
        %327 = vset.pattern.permute.xlu0 0
        %328 = vperm.xlu0 %327, %v290
        %v329 = vpop.permute.xlu0 %328
        %332 = vset.pattern.permute.xlu0 0
        %333 = vperm.xlu0 %332, %v291
        %v334 = vpop.permute.xlu0 %333
        %337 = vset.pattern.permute.xlu0 0
        %338 = vperm.xlu0 %337, %v292
        %v339 = vpop.permute.xlu0 %338
        %342 = vset.pattern.permute.xlu0 0
        %343 = vperm.xlu0 %342, %v293
        %v344 = vpop.permute.xlu0 %343
        %347 = vset.pattern.permute.xlu0 0
        %348 = vperm.xlu0 %347, %v294
        %v349 = vpop.permute.xlu0 %348
        %352 = vset.pattern.permute.xlu0 0
        %353 = vperm.xlu0 %352, %v295
        %v354 = vpop.permute.xlu0 %353
        %357 = vset.pattern.permute.xlu0 0
        %358 = vperm.xlu0 %357, %v296
        %v359 = vpop.permute.xlu0 %358
        %v361 = vmul.f32 %v324, %v305
        %v362 = vmul.f32 %v324, %v306
        %v363 = vmul.f32 %v329, %v307
        %v364 = vmul.f32 %v329, %v308
        %v365 = vmul.f32 %v334, %v309
        %v366 = vmul.f32 %v334, %v310
        %v367 = vmul.f32 %v339, %v311
        %v368 = vmul.f32 %v339, %v312
        %v369 = vmul.f32 %v344, %v313
        %v370 = vmul.f32 %v344, %v314
        %v371 = vmul.f32 %v349, %v315
        %v372 = vmul.f32 %v349, %v316
        %v373 = vmul.f32 %v354, %v317
        %v374 = vmul.f32 %v354, %v318
        %v375 = vmul.f32 %v359, %v319
        %v376 = vmul.f32 %v359, %v320
        %378 = vset.pattern.permute.xlu0 0
        %379 = vperm.xlu0 %378, %v297
        %v380 = vpop.permute.xlu0 %379
        %383 = vset.pattern.permute.xlu0 0
        %384 = vperm.xlu0 %383, %v298
        %v385 = vpop.permute.xlu0 %384
        %388 = vset.pattern.permute.xlu0 0
        %389 = vperm.xlu0 %388, %v299
        %v390 = vpop.permute.xlu0 %389
        %393 = vset.pattern.permute.xlu0 0
        %394 = vperm.xlu0 %393, %v300
        %v395 = vpop.permute.xlu0 %394
        %398 = vset.pattern.permute.xlu0 0
        %399 = vperm.xlu0 %398, %v301
        %v400 = vpop.permute.xlu0 %399
        %403 = vset.pattern.permute.xlu0 0
        %404 = vperm.xlu0 %403, %v302
        %v405 = vpop.permute.xlu0 %404
        %408 = vset.pattern.permute.xlu0 0
        %409 = vperm.xlu0 %408, %v303
        %v410 = vpop.permute.xlu0 %409
        %413 = vset.pattern.permute.xlu0 0
        %414 = vperm.xlu0 %413, %v304
        %v415 = vpop.permute.xlu0 %414
        %v417 = vadd.f32 %v361, %v380
        %v418 = vadd.f32 %v362, %v380
        %v419 = vadd.f32 %v363, %v385
        %v420 = vadd.f32 %v364, %v385
        %v421 = vadd.f32 %v365, %v390
        %v422 = vadd.f32 %v366, %v390
        %v423 = vadd.f32 %v367, %v395
        %v424 = vadd.f32 %v368, %v395
        %v425 = vadd.f32 %v369, %v400
        %v426 = vadd.f32 %v370, %v400
        %v427 = vadd.f32 %v371, %v405
        %v428 = vadd.f32 %v372, %v405
        %v429 = vadd.f32 %v373, %v410
        %v430 = vadd.f32 %v374, %v410
        %v431 = vadd.f32 %v375, %v415
        %v432 = vadd.f32 %v376, %v415
        %433 = vst [vmem:[%s206] sm:$0xff] %v417
        %434 = vst [vmem:[%s206 + $0x8] sm:$0xff] %v418
        %435 = vst [vmem:[%s206 + $0x10] sm:$0xff] %v419
        %436 = vst [vmem:[%s206 + $0x18] sm:$0xff] %v420
        %437 = vst [vmem:[%s206 + $0x20] sm:$0xff] %v421
        %438 = vst [vmem:[%s206 + $0x28] sm:$0xff] %v422
        %439 = vst [vmem:[%s206 + $0x30] sm:$0xff] %v423
        %440 = vst [vmem:[%s206 + $0x38] sm:$0xff] %v424
        %441 = vst [vmem:[%s206 + $0x40] sm:$0xff] %v425
        %442 = vst [vmem:[%s206 + $0x48] sm:$0xff] %v426
        %443 = vst [vmem:[%s206 + $0x50] sm:$0xff] %v427
        %444 = vst [vmem:[%s206 + $0x58] sm:$0xff] %v428
        %445 = vst [vmem:[%s206 + $0x60] sm:$0xff] %v429
        %446 = vst [vmem:[%s206 + $0x68] sm:$0xff] %v430
        %447 = vst [vmem:[%s206 + $0x70] sm:$0xff] %v431
        %448 = vst [vmem:[%s206 + $0x78] sm:$0xff] %v432
        %s449 = sand.u32 %s112, 1
        %s450 = scalar_lea.sflag [#allocation4], %s449
        %s451 = sand.u32 %s112, 1
        %s452 = smul.addr %s451, 128
        %s453 = scalar_lea.vmem [#allocation5], %s452
        // Predicated region
        $region37: #{tpu_custom_call.1} parent=31 // pred_check
          %p454 = pneg %p122
        $region38: #{tpu_custom_call.1} parent=31 // pred_check_branch
          %456 = sbr.rel (%p454) target = $region40
        $region39: #{tpu_custom_call.1} parent=31 // pred_region
          %s457 = smul.u32 2, %s25
          %s459 = ssub.s32 2048, 2048
          %460 = vsyncadd %s450, %s459
          %s461 = smul.addr %s24, 16
          %s462 = sadd.s32 %s457, %s461
          %s463 = smul.addr %s462, 128
          %s464 = scalar_lea.hbm %s3, %s463
          %s465 = sshll.u32 %s453, 4
          %s466 = int_to_ptr.vmem [resolvable:$true] %s465
          %471 = dma.vmem_to_hbm [thread:$0]  %s466, 2048, %s464, %s450, 256, 256, 16
        $region40: #{tpu_custom_call.1} parent=31 // pred_fallthru
          _
      $region32: #{tpu_custom_call.1} parent=5 // pred_fallthru
        _
      %p472 = scmp.le.s32.totalorder 2, %s15
      // Predicated region
      $region41: #{tpu_custom_call.1} parent=5 // pred_check
        %p473 = pneg %p472
      $region42: #{tpu_custom_call.1} parent=5 // pred_check_branch
        %475 = sbr.rel (%p473) target = $region44
      $region43: #{tpu_custom_call.1} parent=5 // pred_region
        %s476 = ssub.s32 %s15, 2
        // Predicated region
        $region45: #{tpu_custom_call.1} parent=43 // pred_check
          %p477 = pneg %p128
        $region46: #{tpu_custom_call.1} parent=43 // pred_check_branch
          %479 = sbr.rel (%p477) target = $region48
        $region47: #{tpu_custom_call.1} parent=43 // pred_region
          %s480 = sand.u32 %s113, 1
          %s481 = scalar_lea.sflag [#allocation4], %s480
          %s482 = sand.u32 %s113, 1
          %s483 = smul.addr %s482, 128
          %s484 = scalar_lea.vmem [#allocation5], %s483
          %485 = dma.done %s481, 2048
        $region48: #{tpu_custom_call.1} parent=43 // pred_fallthru
          _
      $region44: #{tpu_custom_call.1} parent=5 // pred_fallthru
        _
    $region6: #{tpu_custom_call.1} parent=1 // loop_footer
      %s19 = sadd.s32 1, %s15
    $region7: #{tpu_custom_call.1} parent=1 // loop_footer_branch
      %14 = sbr.rel target = $region3
    $region8: #{tpu_custom_call.1} parent=1 // loop_exit
      _
    %486 = vsyncpa [#allocation3], 1
    %s487 = scalar_lea.sflag [#allocation3], 1
    %488 = vsyncpa %s487, 1
    %489 = vsyncpa [#allocation4], 1
    %s490 = scalar_lea.sflag [#allocation4], 1
    %491 = vsyncpa %s490, 1

</llo_original>
